<compile_context>
chip_gen: v5e
topology: v5e:2x2
jax: 0.10.0
libtpu: 0.0.40
codegen_flags: <defaults>
</compile_context>

<pallas_src>
import jax
import jax.numpy as jnp
from jax.experimental import pallas as pl
from jax.experimental.pallas import tpu as pltpu


# --------------------------------------------------------------------------- #
# Kernel
# --------------------------------------------------------------------------- #
def phi3_mlp_kernel(x_ref, wgu_ref, wd_ref, o_ref, acc_ref):
    # x_ref:   [tm, H]     token tile (resident across the I axis)
    # wgu_ref: [2, H, ti]  merged gate(0)/up(1) weight slice, MXU-native [K, N]
    # wd_ref:  [ti, H]     down-proj weight slice, MXU-native [K, N]
    # o_ref:   [tm, H]     output tile
    # acc_ref: [tm, H]     persistent f32 accumulator (VMEM scratch)
    k = pl.program_id(1)

    @pl.when(k == 0)
    def _():
        acc_ref[...] = jnp.zeros_like(acc_ref)

    x = x_ref[...]
    # Standard [M, K] @ [K, N] matmuls -- no transposed-RHS contractions.
    gate = jnp.dot(x, wgu_ref[0], preferred_element_type=jnp.float32)
    up = jnp.dot(x, wgu_ref[1], preferred_element_type=jnp.float32)

    # h = up * SiLU(gate) in f32 (VPU + EUP), downcast only for the MXU.
    h = up * (gate * jax.nn.sigmoid(gate))

    acc_ref[...] += jnp.dot(h.astype(wd_ref.dtype), wd_ref[...],
                            preferred_element_type=jnp.float32)

    @pl.when(k == pl.num_programs(1) - 1)
    def _():
        o_ref[...] = acc_ref[...].astype(o_ref.dtype)


# --------------------------------------------------------------------------- #
# Weight preparation (one-time, amortized at model-load time)
# --------------------------------------------------------------------------- #
def prepare_phi3_mlp_weights(w_gate_up, w_down):
    """Convert PyTorch nn.Linear weights into kernel-native layouts.

    w_gate_up: [2*I, H]  (rows 0..I-1 = gate, rows I..2I-1 = up)
    w_down:    [H, I]
    returns (wgu_k [2, H, I], wd_k [I, H])
    """
    two_i, H = w_gate_up.shape
    I = two_i // 2
    assert two_i == 2 * I, "gate_up_proj weight must have an even first dim"
    wgu_k = jnp.transpose(w_gate_up.reshape(2, I, H), (0, 2, 1))  # [2, H, I]
    wd_k = w_down.T                                               # [I, H]
    return wgu_k, wd_k


# --------------------------------------------------------------------------- #
# Tiling / VMEM helpers
# --------------------------------------------------------------------------- #
def _round_up(x, m):
    return ((x + m - 1) // m) * m


def _pick_tile(total, preferred, align):
    """Largest t <= preferred with t % align == 0 and total % t == 0; else total."""
    if total <= preferred:
        return total
    t = (preferred // align) * align
    while t >= align:
        if total % t == 0:
            return t
        t -= align
    return total


def _device_kind():
    try:
        return jax.devices()[0].device_kind.lower()
    except Exception:
        return ""


def _vmem_capacity_bytes():
    try:
        info = pltpu.get_tpu_info()
        cap = getattr(info, "vmem_capacity_bytes", None)
        if cap:
            return int(cap)
    except Exception:
        pass
    return (64 << 20) if "v7" in _device_kind() else (128 << 20)


def _device_tile_targets():
    kind = _device_kind()
    if "v7" in kind:
        return 512, 512      # 64 MiB VMEM: keep working set ~<52 MiB
    if "v6" in kind:
        return 1024, 512     # ridge ~650 FLOPs/byte -> need tall token tiles
    if "v5 lite" in kind or "v5e" in kind or "v5lite" in kind:
        return 512, 1024     # ridge ~240; big ti cuts grid-step overhead
    return 512, 512


def _select_tiles(M, H, I, act_itemsize, w_itemsize, tm_target, ti_target, budget):
    align = 16 if act_itemsize < 4 else 8   # bf16 sublane packing wants 16
    tm = min(tm_target, _round_up(M, align))
    tm = max(align, (tm // align) * align)
    ti = _pick_tile(I, ti_target, 128)

    def est(tm_, ti_):
        return (2 * tm_ * H * act_itemsize         # x tile (double-buffered)
                + 2 * tm_ * H * act_itemsize       # out tile (double-buffered)
                + tm_ * H * 4                      # f32 accumulator scratch
                + 2 * (2 * H * ti_ * w_itemsize)   # merged gate/up block x2 bufs
                + 2 * (ti_ * H * w_itemsize))      # down block x2 bufs

    while est(tm, ti) > budget:
        # Shrink ti first: it only affects weight-buffer size, not arithmetic
        # intensity (which is ~tm FLOPs per weight byte).
        if ti > 128:
            new_ti = _pick_tile(I, max(128, ti // 2), 128)
            if new_ti < ti:
                ti = new_ti
                continue
        if tm > align:
            tm = max(align, ((tm // 2) // align) * align)
            continue
        break  # cannot shrink further; let the compiler try anyway
    return tm, ti


# --------------------------------------------------------------------------- #
# Wrapper
# --------------------------------------------------------------------------- #
def phi3_mlp(hidden_states, wgu_k, wd_k, *, tm_target=None, ti_target=None):
    """Pallas Phi3MLP forward.

    hidden_states: [B, S, H]
    wgu_k:         [2, H, I]  from prepare_phi3_mlp_weights
    wd_k:          [I, H]     from prepare_phi3_mlp_weights
    returns:       [B, S, H]
    """
    B, S, H = hidden_states.shape
    two, h2, I = wgu_k.shape
    assert two == 2 and h2 == H, "wgu_k must be [2, H, I]"
    assert wd_k.shape == (I, H), "wd_k must be [I, H]"

    M = B * S
    xm = hidden_states.reshape(M, H)

    act_itemsize = hidden_states.dtype.itemsize
    w_itemsize = wgu_k.dtype.itemsize

    # Device-aware tile targets and VMEM budget.
    dtm, dti = _device_tile_targets()
    tm_target = dtm if tm_target is None else tm_target
    ti_target = dti if ti_target is None else ti_target

    cap = _vmem_capacity_bytes()
    vmem_limit = min(cap * 7 // 8, 112 << 20)       # headroom below physical
    budget = vmem_limit - (4 << 20)                 # reserve for internal scratch

    tm, ti = _select_tiles(M, H, I, act_itemsize, w_itemsize,
                           tm_target, ti_target, budget)

    # Pad the token axis so the grid is a clean cdiv (padded rows are zeros ->
    # zero contribution, sliced off afterwards).
    n_m = pl.cdiv(M, tm)
    M_pad = n_m * tm
    if M_pad != M:
        xm = jnp.pad(xm, ((0, M_pad - M), (0, 0)))
    n_i = I // ti

    flops = 6 * M_pad * H * I      # 2*M*H*(2I) gate_up + 2*M*I*H down
    bytes_accessed = int(
        3 * I * H * w_itemsize * n_m          # weights re-streamed per M tile
        + M_pad * H * act_itemsize            # activations read once
        + M_pad * H * act_itemsize)           # output written once

    out = pl.pallas_call(
        phi3_mlp_kernel,
        out_shape=jax.ShapeDtypeStruct((M_pad, H), hidden_states.dtype),
        grid_spec=pltpu.PrefetchScalarGridSpec(
            num_scalar_prefetch=0,
            grid=(n_m, n_i),
            in_specs=[
                # x tile: resident across the I (reduction) axis.
                pl.BlockSpec((tm, H), lambda i, k: (i, 0)),
                # merged gate/up weight slice: columns [k*ti, (k+1)*ti).
                pl.BlockSpec((2, H, ti), lambda i, k: (0, 0, k)),
                # down-proj weight rows [k*ti, (k+1)*ti).
                pl.BlockSpec((ti, H), lambda i, k: (k, 0)),
            ],
            out_specs=pl.BlockSpec((tm, H), lambda i, k: (i, 0)),
            scratch_shapes=[pltpu.VMEM((tm, H), jnp.float32)],
        ),
        compiler_params=pltpu.CompilerParams(
            dimension_semantics=("parallel", "arbitrary"),
            vmem_limit_bytes=int(vmem_limit),
        ),
        cost_estimate=pl.CostEstimate(
            flops=int(flops),
            transcendentals=int(M_pad * I),
            bytes_accessed=bytes_accessed,
        ),
    )(xm, wgu_k, wd_k)

    return out[:M].reshape(B, S, H)


# --------------------------------------------------------------------------- #
# Pure-JAX reference (PyTorch layouts / semantics)
# --------------------------------------------------------------------------- #
def phi3_mlp_ref(hidden_states, w_gate_up, w_down):
    up_states = jnp.einsum("bsh,oh->bso", hidden_states, w_gate_up)
    I = w_gate_up.shape[0] // 2
    gate, up = up_states[..., :I], up_states[..., I:]
    h = up * (gate * jax.nn.sigmoid(gate))
    return jnp.einsum("bsi,hi->bsh", h, w_down)


# --------------------------------------------------------------------------- #
# Self-test
# --------------------------------------------------------------------------- #
if __name__ == "__main__":
    key = jax.random.PRNGKey(0)

    # --- test 1: small config (batch=2, seq=8, hidden=32, intermediate=64) ---
    B, S, H, I = 2, 8, 32, 64
    k1, k2, k3, key = jax.random.split(key, 4)
    x = jax.random.normal(k1, (B, S, H), dtype=jnp.float32)
    w_gate_up = jax.random.normal(k2, (2 * I, H), dtype=jnp.float32) * 0.05
    w_down = jax.random.normal(k3, (H, I), dtype=jnp.float32) * 0.05

    wgu_k, wd_k = prepare_phi3_mlp_weights(w_gate_up, w_down)
    out = jax.block_until_ready(phi3_mlp(x, wgu_k, wd_k))
    ref = phi3_mlp_ref(x, w_gate_up, w_down)
    assert out.shape == (B, S, H)
    assert jnp.allclose(out, ref, atol=2e-5, rtol=2e-5), (
        f"test1 max abs err {jnp.max(jnp.abs(out - ref))}")

    # --- test 2: ragged token count (B*S = 111) exercises M padding path ---
    B, S, H, I = 3, 37, 256, 512
    k1, k2, k3, key = jax.random.split(key, 4)
    x = jax.random.normal(k1, (B, S, H), dtype=jnp.float32)
    w_gate_up = jax.random.normal(k2, (2 * I, H), dtype=jnp.float32) * 0.02
    w_down = jax.random.normal(k3, (H, I), dtype=jnp.float32) * 0.02

    wgu_k, wd_k = prepare_phi3_mlp_weights(w_gate_up, w_down)
    out = jax.block_until_ready(phi3_mlp(x, wgu_k, wd_k))
    ref = phi3_mlp_ref(x, w_gate_up, w_down)
    assert out.shape == (B, S, H)
    assert jnp.allclose(out, ref, atol=1e-4, rtol=1e-4), (
        f"test2 max abs err {jnp.max(jnp.abs(out - ref))}")

    print("KERNEL_OK")
</pallas_src>

<mosaic_0001>
module attributes {stable_mosaic.version = 11 : i64} {
  func.func @phi3_mlp_kernel(%arg0: i32, %arg1: i32, %arg2: memref<16x32xf32, #tpu.memory_space<vmem>>, %arg3: memref<2x32x64xf32, #tpu.memory_space<vmem>>, %arg4: memref<64x32xf32, #tpu.memory_space<vmem>>, %arg5: memref<16x32xf32, #tpu.memory_space<vmem>>, %arg6: memref<16x32xf32, #tpu.memory_space<vmem>>) attributes {dimension_semantics = [#tpu.dimension_semantics<parallel>, #tpu.dimension_semantics<arbitrary>], iteration_bounds = array<i64: 1, 1>, scalar_prefetch = 0 : i64, scratch_operands = 1 : i64, tpu.core_type = #tpu.core_type<tc>, window_params = [{transform_indices = @transform_0, window_bounds = array<i64: 16, 32>}, {transform_indices = @transform_1, window_bounds = array<i64: 2, 32, 64>}, {transform_indices = @transform_2, window_bounds = array<i64: 64, 32>}, {transform_indices = @transform_3, window_bounds = array<i64: 16, 32>}]} {
    %c0_i32 = arith.constant 0 : i32
    %0 = arith.cmpi eq, %arg1, %c0_i32 : i32
    %1 = arith.extui %0 : i1 to i32
    %c0_i32_0 = arith.constant 0 : i32
    %2 = arith.cmpi ne, %1, %c0_i32_0 : i32
    scf.if %2 {
      %cst_18 = arith.constant 0.000000e+00 : f32
      %25 = vector.broadcast %cst_18 : f32 to vector<16x32xf32>
      %c0_19 = arith.constant 0 : index
      %c0_20 = arith.constant 0 : index
      %26 = vector.load %arg6[%c0_19, %c0_20] : memref<16x32xf32, #tpu.memory_space<vmem>>, vector<16x32xf32>
      tpu.vector_store %arg6[%c0_19, %c0_20], %25 {strides = array<i32>} : memref<16x32xf32, #tpu.memory_space<vmem>>, vector<16x32xf32>,
    } else {
    }
    %c0 = arith.constant 0 : index
    %c0_1 = arith.constant 0 : index
    %3 = vector.load %arg2[%c0, %c0_1] : memref<16x32xf32, #tpu.memory_space<vmem>>, vector<16x32xf32>
    %c0_2 = arith.constant 0 : index
    %c0_3 = arith.constant 0 : index
    %c0_4 = arith.constant 0 : index
    %4 = vector.load %arg3[%c0_2, %c0_3, %c0_4] : memref<2x32x64xf32, #tpu.memory_space<vmem>>, vector<1x32x64xf32>
    %5 = vector.shape_cast %4 : vector<1x32x64xf32> to vector<32x64xf32>
    %cst = arith.constant dense<0.000000e+00> : vector<16x64xf32>
    %6 = tpu.matmul %3, %5, %cst {dimension_numbers = #tpu.dot_dimension_numbers<[1], [0], [0], [1], [0, 0, 1, 1], [], []>} : vector<16x32xf32>, vector<32x64xf32>, vector<16x64xf32> -> vector<16x64xf32>
    %c1 = arith.constant 1 : index
    %c0_5 = arith.constant 0 : index
    %c0_6 = arith.constant 0 : index
    %7 = vector.load %arg3[%c1, %c0_5, %c0_6] : memref<2x32x64xf32, #tpu.memory_space<vmem>>, vector<1x32x64xf32>
    %8 = vector.shape_cast %7 : vector<1x32x64xf32> to vector<32x64xf32>
    %cst_7 = arith.constant dense<0.000000e+00> : vector<16x64xf32>
    %9 = tpu.matmul %3, %8, %cst_7 {dimension_numbers = #tpu.dot_dimension_numbers<[1], [0], [0], [1], [0, 0, 1, 1], [], []>} : vector<16x32xf32>, vector<32x64xf32>, vector<16x64xf32> -> vector<16x64xf32>
    %10 = arith.negf %6 : vector<16x64xf32>
    %11 = math.exp %10 : vector<16x64xf32>
    %cst_8 = arith.constant 1.000000e+00 : f32
    %12 = vector.broadcast %cst_8 : f32 to vector<16x64xf32>
    %13 = arith.addf %12, %11 : vector<16x64xf32>
    %14 = arith.divf %12, %13 : vector<16x64xf32>
    %15 = arith.mulf %6, %14 : vector<16x64xf32>
    %16 = arith.mulf %9, %15 : vector<16x64xf32>
    %c0_9 = arith.constant 0 : index
    %c0_10 = arith.constant 0 : index
    %17 = vector.load %arg6[%c0_9, %c0_10] : memref<16x32xf32, #tpu.memory_space<vmem>>, vector<16x32xf32>
    %c0_11 = arith.constant 0 : index
    %c0_12 = arith.constant 0 : index
    %18 = vector.load %arg4[%c0_11, %c0_12] : memref<64x32xf32, #tpu.memory_space<vmem>>, vector<64x32xf32>
    %cst_13 = arith.constant dense<0.000000e+00> : vector<16x32xf32>
    %19 = tpu.matmul %16, %18, %cst_13 {dimension_numbers = #tpu.dot_dimension_numbers<[1], [0], [0], [1], [0, 0, 1, 1], [], []>} : vector<16x64xf32>, vector<64x32xf32>, vector<16x32xf32> -> vector<16x32xf32>
    %20 = arith.addf %17, %19 : vector<16x32xf32>
    %c0_14 = arith.constant 0 : index
    %c0_15 = arith.constant 0 : index
    %21 = vector.load %arg6[%c0_14, %c0_15] : memref<16x32xf32, #tpu.memory_space<vmem>>, vector<16x32xf32>
    tpu.vector_store %arg6[%c0_14, %c0_15], %20 {strides = array<i32>} : memref<16x32xf32, #tpu.memory_space<vmem>>, vector<16x32xf32>,
    %c0_i32_16 = arith.constant 0 : i32
    %22 = arith.cmpi eq, %arg1, %c0_i32_16 : i32
    %23 = arith.extui %22 : i1 to i32
    %c0_i32_17 = arith.constant 0 : i32
    %24 = arith.cmpi ne, %23, %c0_i32_17 : i32
    scf.if %24 {
      %c0_18 = arith.constant 0 : index
      %c0_19 = arith.constant 0 : index
      %25 = vector.load %arg6[%c0_18, %c0_19] : memref<16x32xf32, #tpu.memory_space<vmem>>, vector<16x32xf32>
      %c0_20 = arith.constant 0 : index
      %c0_21 = arith.constant 0 : index
      %26 = vector.load %arg5[%c0_20, %c0_21] : memref<16x32xf32, #tpu.memory_space<vmem>>, vector<16x32xf32>
      tpu.vector_store %arg5[%c0_20, %c0_21], %25 {strides = array<i32>} : memref<16x32xf32, #tpu.memory_space<vmem>>, vector<16x32xf32>,
    } else {
    }
    return
  }
  func.func @transform_0(%arg0: i32, %arg1: i32) -> (i32, i32) {
    %c0_i32 = arith.constant 0 : i32
    %c0_i32_0 = arith.constant 0 : i32
    return %arg0, %c0_i32 : i32, i32
  }
  func.func @transform_1(%arg0: i32, %arg1: i32) -> (i32, i32, i32) {
    %c0_i32 = arith.constant 0 : i32
    %c0_i32_0 = arith.constant 0 : i32
    %c0_i32_1 = arith.constant 0 : i32
    return %c0_i32, %c0_i32_0, %arg1 : i32, i32, i32
  }
  func.func @transform_2(%arg0: i32, %arg1: i32) -> (i32, i32) {
    %c0_i32 = arith.constant 0 : i32
    %c0_i32_0 = arith.constant 0 : i32
    return %arg1, %c0_i32 : i32, i32
  }
  func.func @transform_3(%arg0: i32, %arg1: i32) -> (i32, i32) {
    %c0_i32 = arith.constant 0 : i32
    %c0_i32_0 = arith.constant 0 : i32
    return %arg0, %c0_i32 : i32, i32
  }
}

</mosaic_0001>

<llo_original>
// kernel: tpu_custom_call.1
$region0: #{tpu_custom_call.1}
  #allocation0 [shape = 'u32[]', space=smem, size = 0x4, offset = 0x4, fixed_abs, tag = 'smem constant byte address 0x4 - core index']
  #allocation1 [shape = 'u32[72,128]{1,0:T(1,128)}', space=vmem, size = 0x9000, scoped, tag = 'internal scratch']
  #allocation2 [shape = 'f32[16,32]{1,0:T(8,128)}', space=vmem, size = 0x2000, scoped, tag = 'scratch operand']
  %s0 = inlined_call_operand.vmem [shape: f32[16,32], index: 0, kind: input, shape index: {}]
  %s1 = inlined_call_operand.vmem [shape: f32[2,32,64], index: 1, kind: input, shape index: {}]
  %s2 = inlined_call_operand.vmem [shape: f32[64,32], index: 2, kind: input, shape index: {}]
  %s3 = inlined_call_operand.hbm [shape: f32[16,32], index: 3, kind: output, shape index: {}]
  %s4 = sld [smem:[#allocation0]]
  $region30: #{tpu_custom_call.1} parent=0
    _
  %s6 = ssub.s32 1, %s4
  %s7 = scalar_select 0, %s6, %s4
  $region1: #{tpu_custom_call.1} parent=0
    #allocation3 [shape = 'u8[8192]{0}', space=vmem, size = 0x2000, scoped, tag = 'output window, operand 0, single buffered']
    #allocation4 [shape = 's32[1]{0}', space=sflag, size = 0x4, scoped, tag = 'scoped memory for tpu_custom_call.1']
    %8 = vsyncpa [#allocation4], 0
    // Predicated region
    $region2: #{tpu_custom_call.1} parent=1 // pred_check
      _
    $region3: #{tpu_custom_call.1} parent=1 // pred_check_branch
      %10 = sbr.rel (0) target = $region5
    $region4: #{tpu_custom_call.1} parent=1 // pred_region
      _
    $region5: #{tpu_custom_call.1} parent=1 // pred_fallthru
      _
    // Predicated region
    $region6: #{tpu_custom_call.1} parent=1 // pred_check
      _
    $region7: #{tpu_custom_call.1} parent=1 // pred_check_branch
      %12 = sbr.rel (0) target = $region9
    $region8: #{tpu_custom_call.1} parent=1 // pred_region
      _
    $region9: #{tpu_custom_call.1} parent=1 // pred_fallthru
      _
    // Predicated region
    $region10: #{tpu_custom_call.1} parent=1 // pred_check
      _
    $region11: #{tpu_custom_call.1} parent=1 // pred_check_branch
      %14 = sbr.rel (0) target = $region13
    $region12: #{tpu_custom_call.1} parent=1 // pred_region
      _
    $region13: #{tpu_custom_call.1} parent=1 // pred_fallthru
      _
    %p15 = scmp.eq.s32.totalorder 0, 0
    // Predicated region
    $region14: #{tpu_custom_call.1} parent=1 // pred_check
      %p16 = pneg %p15
    $region15: #{tpu_custom_call.1} parent=1 // pred_check_branch
      %18 = sbr.rel (%p16) target = $region17
    $region16: #{tpu_custom_call.1} parent=1 // pred_region
      %vm19 = vcmask 261120
      %20 = vst.msk [vmem:[#allocation2] sm:$0xff] %vm19, 0.0
      %21 = vst.msk [vmem:[#allocation2 + $0x8] sm:$0xff] %vm19, 0.0
    $region17: #{tpu_custom_call.1} parent=1 // pred_fallthru
      _
    %v22 = vld [vmem:[%s0] sm:$0xff]
    %v23 = vld [vmem:[%s0 + $0x8] sm:$0xff]
    %v24 = vld [vmem:[%s1] sm:$0xff]
    %v25 = vld [vmem:[%s1 + $0x8] sm:$0xff]
    %v26 = vld [vmem:[%s1 + $0x10] sm:$0xff]
    %v27 = vld [vmem:[%s1 + $0x18] sm:$0xff]
    %vm28 = vcmask 261120
    %v30 = vsel %vm28, %v22, 0
    %v33 = vsel %vm28, %v23, 0
    %35 = vmatpush.msra.mxu0 0.0
    %36 = vmatpush.msra.mxu0 0.0
    %37 = vmatpush.msra.mxu0 0.0
    %38 = vmatpush.msra.mxu0 0.0
    %39 = vmatpush.msra.mxu0 0.0
    %40 = vmatpush.msra.mxu0 0.0
    %41 = vmatpush.msra.mxu0 0.0
    %42 = vmatpush.msra.mxu0 0.0
    %43 = vmatpush.msra.mxu0 0.0
    %44 = vmatpush.msra.mxu0 0.0
    %45 = vmatpush.msra.mxu0 0.0
    %46 = vmatpush.msra.mxu0 0.0
    %47 = vmatpush.msra.mxu0 %v27
    %48 = vmatpush.msra.mxu0 %v26
    %49 = vmatpush.msra.mxu0 %v25
    %50 = vmatpush.msra.mxu0 %v24
    %51 = vmatmul.f32.gmra.mxu0 %v30
    %v52 = vpop.f32.mrf.mxu0
    %v53 = vadd.f32 0.0, %v52
    %54 = vmatmul.f32.gmra.mxu0 %v33
    %v55 = vpop.f32.mrf.mxu0
    %v56 = vadd.f32 0.0, %v55
    %57 = vdwg.mxu0
    %s58 = scalar_lea.vmem %s1, 32
    %v59 = vld [vmem:[%s58] sm:$0xff]
    %v60 = vld [vmem:[%s58 + $0x8] sm:$0xff]
    %v61 = vld [vmem:[%s58 + $0x10] sm:$0xff]
    %v62 = vld [vmem:[%s58 + $0x18] sm:$0xff]
    %63 = vmatpush.msra.mxu0 0.0
    %64 = vmatpush.msra.mxu0 0.0
    %65 = vmatpush.msra.mxu0 0.0
    %66 = vmatpush.msra.mxu0 0.0
    %67 = vmatpush.msra.mxu0 0.0
    %68 = vmatpush.msra.mxu0 0.0
    %69 = vmatpush.msra.mxu0 0.0
    %70 = vmatpush.msra.mxu0 0.0
    %71 = vmatpush.msra.mxu0 0.0
    %72 = vmatpush.msra.mxu0 0.0
    %73 = vmatpush.msra.mxu0 0.0
    %74 = vmatpush.msra.mxu0 0.0
    %75 = vmatpush.msra.mxu0 %v62
    %76 = vmatpush.msra.mxu0 %v61
    %77 = vmatpush.msra.mxu0 %v60
    %78 = vmatpush.msra.mxu0 %v59
    %79 = vmatmul.f32.gmra.mxu0 %v30
    %v80 = vpop.f32.mrf.mxu0
    %v81 = vadd.f32 0.0, %v80
    %82 = vmatmul.f32.gmra.mxu0 %v33
    %v83 = vpop.f32.mrf.mxu0
    %v84 = vadd.f32 0.0, %v83
    %85 = vdwg.mxu0
    %v86 = vxor.u32 %v53, 2147483648
    %v87 = vxor.u32 %v56, 2147483648
    %v88 = vmul.f32 %v86, 1.442695
    %v89 = vpow.pop %v88
    %v90 = vmul.f32 %v87, 1.442695
    %v91 = vpow.pop %v90
    %v92 = vadd.f32 %v89, 1.0
    %v93 = vadd.f32 %v91, 1.0
    %v94 = vrcp.pop %v92
    %v95 = vmul.f32 %v92, %v94
    %v96 = vsub.f32 1.0, %v95
    %v97 = vmul.f32 %v94, %v96
    %v98 = vadd.f32 %v94, %v97
    %vm99 = vweird.f32 %v92
    %vm100 = vweird.f32 %v94
    %vm101 = vmor %vm99, %vm100
    %v102 = vsel %vm101, %v94, %v98
    %v103 = vand.u32 2147483647, %v92
    %vm104 = vcmp.eq.f32.partialorder %v103, 8.507059e+37
    %v105 = vand.u32 %v92, 2147483648
    %v106 = vor.u32 1.1754944e-38, %v105
    %v107 = vsel %vm104, %v106, %v102
    %v108 = vmul.f32 1.0, %v107
    %v109 = vrcp.pop %v93
    %v110 = vmul.f32 %v93, %v109
    %v111 = vsub.f32 1.0, %v110
    %v112 = vmul.f32 %v109, %v111
    %v113 = vadd.f32 %v109, %v112
    %vm114 = vweird.f32 %v93
    %vm115 = vweird.f32 %v109
    %vm116 = vmor %vm114, %vm115
    %v117 = vsel %vm116, %v109, %v113
    %v118 = vand.u32 2147483647, %v93
    %vm119 = vcmp.eq.f32.partialorder %v118, 8.507059e+37
    %v120 = vand.u32 %v93, 2147483648
    %v121 = vor.u32 1.1754944e-38, %v120
    %v122 = vsel %vm119, %v121, %v117
    %v123 = vmul.f32 1.0, %v122
    %v124 = vmul.f32 %v53, %v108
    %v125 = vmul.f32 %v56, %v123
    %v126 = vmul.f32 %v81, %v124
    %v127 = vmul.f32 %v84, %v125
    %v128 = vld [vmem:[#allocation2] sm:$0xff]
    %v129 = vld [vmem:[#allocation2 + $0x8] sm:$0xff]
    %v130 = vld [vmem:[%s2] sm:$0xff]
    %v131 = vld [vmem:[%s2 + $0x8] sm:$0xff]
    %v132 = vld [vmem:[%s2 + $0x10] sm:$0xff]
    %v133 = vld [vmem:[%s2 + $0x18] sm:$0xff]
    %v134 = vld [vmem:[%s2 + $0x20] sm:$0xff]
    %v135 = vld [vmem:[%s2 + $0x28] sm:$0xff]
    %v136 = vld [vmem:[%s2 + $0x30] sm:$0xff]
    %v137 = vld [vmem:[%s2 + $0x38] sm:$0xff]
    %vm138 = vcmask 523264
    %v140 = vsel %vm138, %v126, 0
    %v143 = vsel %vm138, %v127, 0
    %145 = vmatpush.msra.mxu0 0.0
    %146 = vmatpush.msra.mxu0 0.0
    %147 = vmatpush.msra.mxu0 0.0
    %148 = vmatpush.msra.mxu0 0.0
    %149 = vmatpush.msra.mxu0 0.0
    %150 = vmatpush.msra.mxu0 0.0
    %151 = vmatpush.msra.mxu0 0.0
    %152 = vmatpush.msra.mxu0 0.0
    %153 = vmatpush.msra.mxu0 %v137
    %154 = vmatpush.msra.mxu0 %v136
    %155 = vmatpush.msra.mxu0 %v135
    %156 = vmatpush.msra.mxu0 %v134
    %157 = vmatpush.msra.mxu0 %v133
    %158 = vmatpush.msra.mxu0 %v132
    %159 = vmatpush.msra.mxu0 %v131
    %160 = vmatpush.msra.mxu0 %v130
    %161 = vmatmul.f32.gmra.mxu0 %v140
    %v162 = vpop.f32.mrf.mxu0
    %v163 = vadd.f32 0.0, %v162
    %164 = vmatmul.f32.gmra.mxu0 %v143
    %v165 = vpop.f32.mrf.mxu0
    %v166 = vadd.f32 0.0, %v165
    %167 = vdwg.mxu0
    %v168 = vadd.f32 %v128, %v163
    %v169 = vadd.f32 %v129, %v166
    %170 = vst.msk [vmem:[#allocation2] sm:$0xff] %vm28, %v168
    %171 = vst.msk [vmem:[#allocation2 + $0x8] sm:$0xff] %vm28, %v169
    // Predicated region
    $region18: #{tpu_custom_call.1} parent=1 // pred_check
      %p172 = pneg %p15
    $region19: #{tpu_custom_call.1} parent=1 // pred_check_branch
      %174 = sbr.rel (%p172) target = $region21
    $region20: #{tpu_custom_call.1} parent=1 // pred_region
      %v175 = vld [vmem:[#allocation2] sm:$0xff]
      %v176 = vld [vmem:[#allocation2 + $0x8] sm:$0xff]
      %177 = vst.msk [vmem:[#allocation3] sm:$0xff] %vm28, %v175
      %178 = vst.msk [vmem:[#allocation3 + $0x8] sm:$0xff] %vm28, %v176
    $region21: #{tpu_custom_call.1} parent=1 // pred_fallthru
      _
    // Predicated region
    $region22: #{tpu_custom_call.1} parent=1 // pred_check
      _
    $region23: #{tpu_custom_call.1} parent=1 // pred_check_branch
      %180 = sbr.rel (0) target = $region25
    $region24: #{tpu_custom_call.1} parent=1 // pred_region
      %182 = vsyncadd [#allocation4], 0
      %s183 = sshll.u32 [#allocation3], 4
      %s184 = int_to_ptr.vmem [resolvable:$true] %s183
      %s185 = sshll.u32 %s3, 4
      %s186 = int_to_ptr.hbm [resolvable:$true] %s185
      %191 = dma.vmem_to_hbm [thread:$0]  %s184, 256, %s186, [#allocation4], 128, 128, 8
    $region25: #{tpu_custom_call.1} parent=1 // pred_fallthru
      _
    // Predicated region
    $region26: #{tpu_custom_call.1} parent=1 // pred_check
      _
    $region27: #{tpu_custom_call.1} parent=1 // pred_check_branch
      %193 = sbr.rel (0) target = $region29
    $region28: #{tpu_custom_call.1} parent=1 // pred_region
      %195 = dma.done [#allocation4], 256
    $region29: #{tpu_custom_call.1} parent=1 // pred_fallthru
      _
    %196 = vsyncpa [#allocation4], 1

</llo_original>
